<compile_context>
chip_gen: v7x
topology: tpu7x:2x2x1
jax: 0.10.0
libtpu: 0.0.40
codegen_flags: <defaults>
</compile_context>

<pallas_src>
import functools

import jax
import jax.numpy as jnp
from jax.experimental import pallas as pl
from jax.experimental.pallas import tpu as pltpu

IGNORE_INDEX = -100  # matches nn.NLLLoss default ignore_index / module default


def _ce2d_kernel(x_ref, t_ref, loss_ref, cnt_ref, acc_loss, acc_cnt, *, ignore, hw):
    j = pl.program_id(1)
    nj = pl.num_programs(1)

    @pl.when(j == 0)
    def _init():
        acc_loss[...] = jnp.zeros_like(acc_loss)
        acc_cnt[...] = jnp.zeros_like(acc_cnt)

    x = x_ref[0].astype(jnp.float32)   # (C, T): channels on sublanes, pixels on lanes
    t = t_ref[0]                       # (1, T) int32 labels

    tile = x.shape[1]
    # Mask lanes past the true H*W (last tile may be partial; out-of-bounds lanes
    # hold unspecified / stale data and must not contribute).
    lane = jax.lax.broadcasted_iota(jnp.int32, (1, tile), 1) + j * tile
    valid = (t != ignore) & (lane < hw)                         # (1, T)
    t_safe = jnp.where(valid, t, 0)

    # log_softmax over channels (sublane axis): log p_c = x_c - logsumexp(x)
    m = jnp.max(x, axis=0, keepdims=True)                       # (1, T)
    lse = m + jnp.log(jnp.sum(jnp.exp(x - m), axis=0, keepdims=True))

    # Pick x[target] per pixel via a one-hot compare along the (small) channel axis.
    row = jax.lax.broadcasted_iota(jnp.int32, x.shape, 0)       # (C, T)
    picked = jnp.sum(jnp.where(row == t_safe, x, 0.0), axis=0, keepdims=True)

    # Element-wise accumulation only; jnp.where (not multiply) so garbage lanes
    # (possibly NaN/Inf) cannot leak into the sum.
    acc_loss[...] += jnp.where(valid, lse - picked, 0.0)        # -log p_target
    acc_cnt[...] += valid.astype(jnp.float32)

    @pl.when(j == nj - 1)
    def _finalize():
        loss_ref[...] = jnp.sum(acc_loss[...]).reshape(1, 1, 1)
        cnt_ref[...] = jnp.sum(acc_cnt[...]).reshape(1, 1, 1)


def cross_entropy2d(logits_nchw, target_nhw, th=1.0, ignore=IGNORE_INDEX,
                    *, max_tile_hw=8192):
    """Forward of the PyTorch cross_entropy2d module.

    Args:
      logits_nchw: (N, C, H, W) float logits.
      target_nhw:  (N, H, W) integer class labels (ignore index = `ignore`).
    Returns:
      (loss_scalar_f32, total_valid_pixel_f32_array_of_shape_[1])
    """
    # TODO(synk): the th < 1 branch (softmax-threshold remasking of targets via
    # torch.gather) is not implemented; default forward uses th=1.0 and skips it.
    assert th >= 1.0, "th < 1 path not implemented"

    N, C, H, W = logits_nchw.shape
    HW = H * W

    # Free reshapes of the native NCHW layout -- no transpose, no padding copy.
    x = logits_nchw.reshape(N, C, HW)
    t = target_nhw.reshape(N, 1, HW).astype(jnp.int32)

    # Lane-tile size: whole H*W if it fits (block == full dim, always legal),
    # otherwise a 128-multiple tile with the partial tail masked in-kernel.
    if HW <= max_tile_hw:
        tile_hw = HW
    else:
        tile_hw = max_tile_hw  # multiple of 128
    num_tiles = (HW + tile_hw - 1) // tile_hw

    kernel = functools.partial(_ce2d_kernel, ignore=ignore, hw=HW)

    sums, cnts = pl.pallas_call(
        kernel,
        out_shape=(
            jax.ShapeDtypeStruct((N, 1, 1), jnp.float32),
            jax.ShapeDtypeStruct((N, 1, 1), jnp.float32),
        ),
        grid_spec=pltpu.PrefetchScalarGridSpec(
            num_scalar_prefetch=0,
            grid=(N, num_tiles),
            in_specs=[
                pl.BlockSpec((1, C, tile_hw), lambda n, j: (n, 0, j)),
                pl.BlockSpec((1, 1, tile_hw), lambda n, j: (n, 0, j)),
            ],
            out_specs=[
                pl.BlockSpec((1, 1, 1), lambda n, j: (n, 0, 0)),
                pl.BlockSpec((1, 1, 1), lambda n, j: (n, 0, 0)),
            ],
            scratch_shapes=[
                pltpu.VMEM((1, tile_hw), jnp.float32),
                pltpu.VMEM((1, tile_hw), jnp.float32),
            ],
        ),
        compiler_params=pltpu.CompilerParams(
            dimension_semantics=("parallel", "arbitrary")),
    )(x, t)

    loss_sum = jnp.sum(sums)
    count = jnp.sum(cnts)
    # NLLLoss(size_average=True): mean over non-ignored elements.
    # If count == 0 this is NaN, matching PyTorch's behavior (intentional).
    loss = loss_sum / count
    total_valid_pixel = jnp.reshape(count, (1,)).astype(jnp.float32)
    return loss, total_valid_pixel


def _reference(logits_nchw, target_nhw, ignore=IGNORE_INDEX):
    """Pure-JAX reference for sanity checking."""
    logp = jax.nn.log_softmax(logits_nchw.astype(jnp.float32), axis=1)
    N, C, H, W = logits_nchw.shape
    logp = jnp.transpose(logp, (0, 2, 3, 1)).reshape(-1, C)
    t = target_nhw.reshape(-1).astype(jnp.int32)
    valid = t != ignore
    t_safe = jnp.where(valid, t, 0)
    picked = jnp.take_along_axis(logp, t_safe[:, None], axis=1)[:, 0]
    nll = jnp.where(valid, -picked, 0.0)
    cnt = jnp.sum(valid.astype(jnp.float32))
    return jnp.sum(nll) / cnt, jnp.array([cnt], jnp.float32)


if __name__ == "__main__":
    key = jax.random.PRNGKey(0)
    k1, k2, k3, k4 = jax.random.split(key, 4)

    # Test 1: module-sized input (single HW tile per batch element).
    N, C, H, W = 2, 4, 16, 16
    logits = jax.random.normal(k1, (N, C, H, W), dtype=jnp.float32)
    target = jax.random.randint(k2, (N, H, W), 0, C, dtype=jnp.int32)
    target = target.at[0, 0, :4].set(IGNORE_INDEX)  # sprinkle some ignored pixels

    loss, total_valid = cross_entropy2d(logits, target)
    loss = jax.block_until_ready(loss)
    total_valid = jax.block_until_ready(total_valid)

    ref_loss, ref_valid = _reference(logits, target)
    assert jnp.allclose(loss, ref_loss, rtol=1e-5, atol=1e-5), (loss, ref_loss)
    assert jnp.allclose(total_valid, ref_valid), (total_valid, ref_valid)

    # Test 2: multi-tile HW with a partial (masked) last tile.
    N2, C2, H2, W2 = 1, 5, 20, 20   # HW = 400, tile = 256 -> tiles of 256 and 144
    logits2 = jax.random.normal(k3, (N2, C2, H2, W2), dtype=jnp.float32)
    target2 = jax.random.randint(k4, (N2, H2, W2), 0, C2, dtype=jnp.int32)
    target2 = target2.at[0, 3, 5:9].set(IGNORE_INDEX)

    loss2, valid2 = cross_entropy2d(logits2, target2, max_tile_hw=256)
    loss2 = jax.block_until_ready(loss2)
    valid2 = jax.block_until_ready(valid2)

    ref_loss2, ref_valid2 = _reference(logits2, target2)
    assert jnp.allclose(loss2, ref_loss2, rtol=1e-5, atol=1e-5), (loss2, ref_loss2)
    assert jnp.allclose(valid2, ref_valid2), (valid2, ref_valid2)

    print("KERNEL_OK")
</pallas_src>

<mosaic_0001>
module attributes {stable_mosaic.version = 11 : i64} {
  func.func @_ce2d_kernel(%arg0: i32, %arg1: i32, %arg2: memref<1x4x256xf32, #tpu.memory_space<vmem>>, %arg3: memref<1x1x256xi32, #tpu.memory_space<vmem>>, %arg4: memref<1x1x1xf32, #tpu.memory_space<vmem>>, %arg5: memref<1x1x1xf32, #tpu.memory_space<vmem>>, %arg6: memref<1x256xf32, #tpu.memory_space<vmem>>, %arg7: memref<1x256xf32, #tpu.memory_space<vmem>>) attributes {dimension_semantics = [#tpu.dimension_semantics<parallel>, #tpu.dimension_semantics<arbitrary>], iteration_bounds = array<i64: 2, 1>, scalar_prefetch = 0 : i64, scratch_operands = 2 : i64, tpu.core_type = #tpu.core_type<tc>, window_params = [{transform_indices = @transform_0, window_bounds = array<i64: 1, 4, 256>}, {transform_indices = @transform_1, window_bounds = array<i64: 1, 1, 256>}, {transform_indices = @transform_2, window_bounds = array<i64: 1, 1, 1>}, {transform_indices = @transform_3, window_bounds = array<i64: 1, 1, 1>}]} {
    %c0_i32 = arith.constant 0 : i32
    %0 = arith.cmpi eq, %arg1, %c0_i32 : i32
    %1 = arith.extui %0 : i1 to i32
    %c0_i32_0 = arith.constant 0 : i32
    %2 = arith.cmpi ne, %1, %c0_i32_0 : i32
    scf.if %2 {
      %cst_22 = arith.constant 0.000000e+00 : f32
      %48 = vector.broadcast %cst_22 : f32 to vector<1x256xf32>
      %c0_23 = arith.constant 0 : index
      %c0_24 = arith.constant 0 : index
      %49 = vector.load %arg6[%c0_23, %c0_24] : memref<1x256xf32, #tpu.memory_space<vmem>>, vector<1x256xf32>
      tpu.vector_store %arg6[%c0_23, %c0_24], %48 {strides = array<i32>} : memref<1x256xf32, #tpu.memory_space<vmem>>, vector<1x256xf32>,
      %cst_25 = arith.constant 0.000000e+00 : f32
      %50 = vector.broadcast %cst_25 : f32 to vector<1x256xf32>
      %c0_26 = arith.constant 0 : index
      %c0_27 = arith.constant 0 : index
      %51 = vector.load %arg7[%c0_26, %c0_27] : memref<1x256xf32, #tpu.memory_space<vmem>>, vector<1x256xf32>
      tpu.vector_store %arg7[%c0_26, %c0_27], %50 {strides = array<i32>} : memref<1x256xf32, #tpu.memory_space<vmem>>, vector<1x256xf32>,
    } else {
    }
    %c0 = arith.constant 0 : index
    %c0_1 = arith.constant 0 : index
    %c0_2 = arith.constant 0 : index
    %3 = vector.load %arg2[%c0, %c0_1, %c0_2] : memref<1x4x256xf32, #tpu.memory_space<vmem>>, vector<1x4x256xf32>
    %4 = vector.shape_cast %3 : vector<1x4x256xf32> to vector<4x256xf32>
    %c0_3 = arith.constant 0 : index
    %c0_4 = arith.constant 0 : index
    %c0_5 = arith.constant 0 : index
    %5 = vector.load %arg3[%c0_3, %c0_4, %c0_5] : memref<1x1x256xi32, #tpu.memory_space<vmem>>, vector<1x1x256xi32>
    %6 = vector.shape_cast %5 : vector<1x1x256xi32> to vector<1x256xi32>
    %7 = tpu.iota {dimensions = array<i32: 1>} : vector<1x256xi32>
    %c256_i32 = arith.constant 256 : i32
    %8 = arith.muli %arg1, %c256_i32 : i32
    %9 = vector.broadcast %8 : i32 to vector<1x256xi32>
    %10 = arith.addi %7, %9 : vector<1x256xi32>
    %c-100_i32 = arith.constant -100 : i32
    %11 = vector.broadcast %c-100_i32 : i32 to vector<1x256xi32>
    %12 = arith.cmpi ne, %6, %11 : vector<1x256xi32>
    %c256_i32_6 = arith.constant 256 : i32
    %13 = vector.broadcast %c256_i32_6 : i32 to vector<1x256xi32>
    %14 = arith.cmpi slt, %10, %13 : vector<1x256xi32>
    %15 = arith.andi %12, %14 : vector<1x256xi1>
    %c0_i32_7 = arith.constant 0 : i32
    %16 = vector.broadcast %c0_i32_7 : i32 to vector<1x256xi32>
    %17 = arith.select %15, %6, %16 : vector<1x256xi1>, vector<1x256xi32>
    %cst = arith.constant dense<0xFF800000> : vector<256xf32>
    %18 = vector.multi_reduction <maximumf>, %4, %cst [0] : vector<4x256xf32> to vector<256xf32>
    %19 = vector.shape_cast %18 : vector<256xf32> to vector<1x256xf32>
    %20 = vector.broadcast %19 : vector<1x256xf32> to vector<4x256xf32>
    %21 = arith.subf %4, %20 : vector<4x256xf32>
    %22 = math.exp %21 : vector<4x256xf32>
    %cst_8 = arith.constant dense<0.000000e+00> : vector<256xf32>
    %23 = vector.multi_reduction <add>, %22, %cst_8 [0] : vector<4x256xf32> to vector<256xf32>
    %24 = vector.shape_cast %23 : vector<256xf32> to vector<1x256xf32>
    %25 = math.log %24 : vector<1x256xf32>
    %26 = arith.addf %19, %25 : vector<1x256xf32>
    %27 = tpu.iota {dimensions = array<i32: 0>} : vector<4x256xi32>
    %28 = vector.broadcast %17 : vector<1x256xi32> to vector<4x256xi32>
    %29 = arith.cmpi eq, %27, %28 : vector<4x256xi32>
    %cst_9 = arith.constant 0.000000e+00 : f32
    %30 = vector.broadcast %cst_9 : f32 to vector<4x256xf32>
    %31 = arith.select %29, %4, %30 : vector<4x256xi1>, vector<4x256xf32>
    %cst_10 = arith.constant dense<0.000000e+00> : vector<256xf32>
    %32 = vector.multi_reduction <add>, %31, %cst_10 [0] : vector<4x256xf32> to vector<256xf32>
    %33 = vector.shape_cast %32 : vector<256xf32> to vector<1x256xf32>
    %c0_11 = arith.constant 0 : index
    %c0_12 = arith.constant 0 : index
    %34 = vector.load %arg6[%c0_11, %c0_12] : memref<1x256xf32, #tpu.memory_space<vmem>>, vector<1x256xf32>
    %35 = arith.subf %26, %33 : vector<1x256xf32>
    %cst_13 = arith.constant 0.000000e+00 : f32
    %36 = vector.broadcast %cst_13 : f32 to vector<1x256xf32>
    %37 = arith.select %15, %35, %36 : vector<1x256xi1>, vector<1x256xf32>
    %38 = arith.addf %34, %37 : vector<1x256xf32>
    %c0_14 = arith.constant 0 : index
    %c0_15 = arith.constant 0 : index
    %39 = vector.load %arg6[%c0_14, %c0_15] : memref<1x256xf32, #tpu.memory_space<vmem>>, vector<1x256xf32>
    tpu.vector_store %arg6[%c0_14, %c0_15], %38 {strides = array<i32>} : memref<1x256xf32, #tpu.memory_space<vmem>>, vector<1x256xf32>,
    %c0_16 = arith.constant 0 : index
    %c0_17 = arith.constant 0 : index
    %40 = vector.load %arg7[%c0_16, %c0_17] : memref<1x256xf32, #tpu.memory_space<vmem>>, vector<1x256xf32>
    %41 = arith.extui %15 : vector<1x256xi1> to vector<1x256xi32>
    %42 = arith.sitofp %41 : vector<1x256xi32> to vector<1x256xf32>
    %43 = arith.addf %40, %42 : vector<1x256xf32>
    %c0_18 = arith.constant 0 : index
    %c0_19 = arith.constant 0 : index
    %44 = vector.load %arg7[%c0_18, %c0_19] : memref<1x256xf32, #tpu.memory_space<vmem>>, vector<1x256xf32>
    tpu.vector_store %arg7[%c0_18, %c0_19], %43 {strides = array<i32>} : memref<1x256xf32, #tpu.memory_space<vmem>>, vector<1x256xf32>,
    %c0_i32_20 = arith.constant 0 : i32
    %45 = arith.cmpi eq, %arg1, %c0_i32_20 : i32
    %46 = arith.extui %45 : i1 to i32
    %c0_i32_21 = arith.constant 0 : i32
    %47 = arith.cmpi ne, %46, %c0_i32_21 : i32
    scf.if %47 {
      %c0_22 = arith.constant 0 : index
      %c0_23 = arith.constant 0 : index
      %48 = vector.load %arg6[%c0_22, %c0_23] : memref<1x256xf32, #tpu.memory_space<vmem>>, vector<1x256xf32>
      %49 = vector.shape_cast %48 : vector<1x256xf32> to vector<1x1x256xf32>
      %cst_24 = arith.constant dense<0.000000e+00> : vector<1xf32>
      %50 = vector.multi_reduction <add>, %49, %cst_24 [1, 2] : vector<1x1x256xf32> to vector<1xf32>
      %51 = vector.shape_cast %50 : vector<1xf32> to vector<1x1x1xf32>
      %52 = vector.extract %51[0, 0, 0] : f32 from vector<1x1x1xf32>
      %53 = vector.broadcast %52 : f32 to vector<1x1x1xf32>
      %c0_25 = arith.constant 0 : index
      %c0_26 = arith.constant 0 : index
      %c0_27 = arith.constant 0 : index
      %54 = vector.load %arg4[%c0_25, %c0_26, %c0_27] : memref<1x1x1xf32, #tpu.memory_space<vmem>>, vector<1x1x1xf32>
      tpu.vector_store %arg4[%c0_25, %c0_26, %c0_27], %53 {strides = array<i32>} : memref<1x1x1xf32, #tpu.memory_space<vmem>>, vector<1x1x1xf32>,
      %c0_28 = arith.constant 0 : index
      %c0_29 = arith.constant 0 : index
      %55 = vector.load %arg7[%c0_28, %c0_29] : memref<1x256xf32, #tpu.memory_space<vmem>>, vector<1x256xf32>
      %56 = vector.shape_cast %55 : vector<1x256xf32> to vector<1x1x256xf32>
      %cst_30 = arith.constant dense<0.000000e+00> : vector<1xf32>
      %57 = vector.multi_reduction <add>, %56, %cst_30 [1, 2] : vector<1x1x256xf32> to vector<1xf32>
      %58 = vector.shape_cast %57 : vector<1xf32> to vector<1x1x1xf32>
      %59 = vector.extract %58[0, 0, 0] : f32 from vector<1x1x1xf32>
      %60 = vector.broadcast %59 : f32 to vector<1x1x1xf32>
      %c0_31 = arith.constant 0 : index
      %c0_32 = arith.constant 0 : index
      %c0_33 = arith.constant 0 : index
      %61 = vector.load %arg5[%c0_31, %c0_32, %c0_33] : memref<1x1x1xf32, #tpu.memory_space<vmem>>, vector<1x1x1xf32>
      tpu.vector_store %arg5[%c0_31, %c0_32, %c0_33], %60 {strides = array<i32>} : memref<1x1x1xf32, #tpu.memory_space<vmem>>, vector<1x1x1xf32>,
    } else {
    }
    return
  }
  func.func @transform_0(%arg0: i32, %arg1: i32) -> (i32, i32, i32) {
    %c0_i32 = arith.constant 0 : i32
    %c0_i32_0 = arith.constant 0 : i32
    return %arg0, %c0_i32, %arg1 : i32, i32, i32
  }
  func.func @transform_1(%arg0: i32, %arg1: i32) -> (i32, i32, i32) {
    %c0_i32 = arith.constant 0 : i32
    %c0_i32_0 = arith.constant 0 : i32
    return %arg0, %c0_i32, %arg1 : i32, i32, i32
  }
  func.func @transform_2(%arg0: i32, %arg1: i32) -> (i32, i32, i32) {
    %c0_i32 = arith.constant 0 : i32
    %c0_i32_0 = arith.constant 0 : i32
    %c0_i32_1 = arith.constant 0 : i32
    return %arg0, %c0_i32, %c0_i32_0 : i32, i32, i32
  }
  func.func @transform_3(%arg0: i32, %arg1: i32) -> (i32, i32, i32) {
    %c0_i32 = arith.constant 0 : i32
    %c0_i32_0 = arith.constant 0 : i32
    %c0_i32_1 = arith.constant 0 : i32
    return %arg0, %c0_i32, %c0_i32_0 : i32, i32, i32
  }
}

</mosaic_0001>

<llo_original>
// kernel: tpu_custom_call.1
$region0: #{tpu_custom_call.1}
  #allocation0 [shape = 'u32[]', space=smem, size = 0x4, offset = 0x4, fixed_abs, tag = 'smem constant byte address 0x4 - core index']
  #allocation1 [shape = 'u32[144,128]{1,0:T(1,128)}', space=vmem, size = 0x12000, scoped, tag = 'internal scratch']
  #allocation2 [shape = 'f32[1,256]{1,0:T(1,128)}', space=vmem, size = 0x400, scoped, tag = 'scratch operand']
  #allocation3 [shape = 'f32[1,256]{1,0:T(1,128)}', space=vmem, size = 0x400, scoped, tag = 'scratch operand']
  %s0 = inlined_call_operand.hbm [shape: f32[2,4,256], index: 0, kind: input, shape index: {}]
  %s1 = inlined_call_operand.hbm [shape: s32[2,1,256], index: 1, kind: input, shape index: {}]
  %s2 = inlined_call_operand.vmem [shape: f32[2,1,1], index: 2, kind: output, shape index: {0}]
  %s3 = inlined_call_operand.vmem [shape: f32[2,1,1], index: 3, kind: output, shape index: {1}]
  %4 = xla_tuple %s2, %s3
  %s5 = sld [smem:[#allocation0]]
  $region65: #{tpu_custom_call.1} parent=0
    _
  %s7 = ssub.s32 1, %s5
  %s8 = scalar_select 0, %s7, %s5
  $region1: #{tpu_custom_call.1} parent=0
    #allocation4 [shape = 'u8[8192]{0}', space=vmem, size = 0x2000, scoped, tag = 'input window, operand 0']
    #allocation5 [shape = 's32[2]{0}', space=sflag, size = 0x8, scoped, tag = 'scoped memory for tpu_custom_call.1']
    #allocation6 [shape = 'u8[2048]{0}', space=vmem, size = 0x800, scoped, tag = 'input window, operand 1']
    #allocation7 [shape = 's32[2]{0}', space=sflag, size = 0x8, scoped, tag = 'scoped memory for tpu_custom_call.1']
    %9 = vsyncpa [#allocation5], 0
    %s10 = scalar_lea.sflag [#allocation5], 1
    %11 = vsyncpa %s10, 0
    %12 = vsyncpa [#allocation7], 0
    %s13 = scalar_lea.sflag [#allocation7], 1
    %14 = vsyncpa %s13, 0
    loop: start=0, step=1, limit=4
    $region2: #{tpu_custom_call.1} parent=1 // loop_pre_header
      _
    $region3: #{tpu_custom_call.1} parent=1 // loop_header
      %s16 = sphi 0, %s20
      %p17 = scmp.ge.s32.totalorder %s16, 4
      %s23 = sphi 0, %s35
      %s24 = sphi 0, %s31
      %s25 = sphi 0, %s23
      %s26 = sphi 0, %s24
      %s27 = sphi 0, %s25
      %s28 = sphi 0, %s26
      %s40 = sphi 0, %s42
      %s43 = sphi 0, %s40
      %s44 = sphi 0, %s43
      %s60 = sphi 0, %s44
      %s68 = sphi 0, %s70
      %s71 = sphi 0, %s68
      %s72 = sphi 0, %s71
      %s88 = sphi 0, %s72
      %s94 = sphi 0, %s96
      %s97 = sphi 0, %s94
      %s98 = sphi 0, %s97
      %s114 = sphi 0, %s98
      %s120 = sphi 0, %s122
      %s123 = sphi 0, %s120
      %s124 = sphi 0, %s123
      %s140 = sphi 0, %s124
    $region4: #{tpu_custom_call.1} parent=1 // loop_header_branch
      %19 = sbr.rel (%p17) target = $region8
    $region5: #{tpu_custom_call.1} parent=1 // loop_body
      %s21 = ssub.s32 %s16, 1
      %s22 = ssub.s32 %s16, 2
      %s29 = sadd.s32 1, %s24
      %p30 = scmp.ge.s32.totalorder %s29, 1
      %s31 = scalar_select %p30, 0, %s29
      %s32 = sadd.s32 1, %s23
      %s33 = scalar_select %p30, %s32, %s23
      %p34 = scmp.ge.s32.totalorder %s33, 2
      %s35 = scalar_select %p34, 0, %s33
      %s36 = ssub.s32 %s23, %s35
      %s37 = ssub.s32 %s24, %s31
      %s38 = sor.u32 %s36, %s37
      %p39 = scmp.eq.s32.totalorder %s38, 0
      %s41 = sadd.s32 %s40, 1
      %s42 = scalar_select %p39, %s40, %s41
      %p45 = pneg %p39
      %p46 = scmp.eq.s32.totalorder %s16, 1
      %p47 = por %p45, %p46
      %p48 = scmp.ne.s32.totalorder %s40, %s43
      %p49 = scmp.eq.s32.totalorder %s16, 0
      %p50 = por %p48, %p49
      %p51 = scmp.ne.s32.totalorder %s40, %s43
      %p52 = scmp.eq.s32.totalorder %s21, 1
      %p53 = por %p51, %p52
      %p54 = scmp.ne.s32.totalorder %s43, %s44
      %p55 = scmp.eq.s32.totalorder %s21, 0
      %p56 = por %p54, %p55
      %p57 = scmp.ne.s32.totalorder %s43, %s44
      %p58 = scmp.eq.s32.totalorder %s22, 1
      %p59 = por %p57, %p58
      %p61 = scmp.ne.s32.totalorder %s44, %s60
      %p62 = scmp.eq.s32.totalorder %s22, 0
      %p63 = por %p61, %p62
      %s64 = ssub.s32 %s23, %s35
      %s65 = ssub.s32 %s24, %s31
      %s66 = sor.u32 %s64, %s65
      %p67 = scmp.eq.s32.totalorder %s66, 0
      %s69 = sadd.s32 %s68, 1
      %s70 = scalar_select %p67, %s68, %s69
      %p73 = pneg %p67
      %p74 = scmp.eq.s32.totalorder %s16, 1
      %p75 = por %p73, %p74
      %p76 = scmp.ne.s32.totalorder %s68, %s71
      %p77 = scmp.eq.s32.totalorder %s16, 0
      %p78 = por %p76, %p77
      %p79 = scmp.ne.s32.totalorder %s68, %s71
      %p80 = scmp.eq.s32.totalorder %s21, 1
      %p81 = por %p79, %p80
      %p82 = scmp.ne.s32.totalorder %s71, %s72
      %p83 = scmp.eq.s32.totalorder %s21, 0
      %p84 = por %p82, %p83
      %p85 = scmp.ne.s32.totalorder %s71, %s72
      %p86 = scmp.eq.s32.totalorder %s22, 1
      %p87 = por %p85, %p86
      %p89 = scmp.ne.s32.totalorder %s72, %s88
      %p90 = scmp.eq.s32.totalorder %s22, 0
      %p91 = por %p89, %p90
      %s92 = ssub.s32 %s23, %s35
      %p93 = scmp.eq.s32.totalorder %s92, 0
      %s95 = sadd.s32 %s94, 1
      %s96 = scalar_select %p93, %s94, %s95
      %p99 = pneg %p93
      %p100 = scmp.eq.s32.totalorder %s16, 1
      %p101 = por %p99, %p100
      %p102 = scmp.ne.s32.totalorder %s94, %s97
      %p103 = scmp.eq.s32.totalorder %s16, 0
      %p104 = por %p102, %p103
      %p105 = scmp.ne.s32.totalorder %s94, %s97
      %p106 = scmp.eq.s32.totalorder %s21, 1
      %p107 = por %p105, %p106
      %p108 = scmp.ne.s32.totalorder %s97, %s98
      %p109 = scmp.eq.s32.totalorder %s21, 0
      %p110 = por %p108, %p109
      %p111 = scmp.ne.s32.totalorder %s97, %s98
      %p112 = scmp.eq.s32.totalorder %s22, 1
      %p113 = por %p111, %p112
      %p115 = scmp.ne.s32.totalorder %s98, %s114
      %p116 = scmp.eq.s32.totalorder %s22, 0
      %p117 = por %p115, %p116
      %s118 = ssub.s32 %s23, %s35
      %p119 = scmp.eq.s32.totalorder %s118, 0
      %s121 = sadd.s32 %s120, 1
      %s122 = scalar_select %p119, %s120, %s121
      %p125 = pneg %p119
      %p126 = scmp.eq.s32.totalorder %s16, 1
      %p127 = por %p125, %p126
      %p128 = scmp.ne.s32.totalorder %s120, %s123
      %p129 = scmp.eq.s32.totalorder %s16, 0
      %p130 = por %p128, %p129
      %p131 = scmp.ne.s32.totalorder %s120, %s123
      %p132 = scmp.eq.s32.totalorder %s21, 1
      %p133 = por %p131, %p132
      %p134 = scmp.ne.s32.totalorder %s123, %s124
      %p135 = scmp.eq.s32.totalorder %s21, 0
      %p136 = por %p134, %p135
      %p137 = scmp.ne.s32.totalorder %s123, %s124
      %p138 = scmp.eq.s32.totalorder %s22, 1
      %p139 = por %p137, %p138
      %p141 = scmp.ne.s32.totalorder %s124, %s140
      %p142 = scmp.eq.s32.totalorder %s22, 0
      %p143 = por %p141, %p142
      %p144 = scmp.le.s32.totalorder 1, %s16
      %p145 = scmp.lt.s32.totalorder %s16, 3
      %p146 = pnand %p144, %p145
      %p147 = pneg %p146
      // Predicated region
      $region9: #{tpu_custom_call.1} parent=5 // pred_check
        _
      $region10: #{tpu_custom_call.1} parent=5 // pred_check_branch
        %149 = sbr.rel (%p146) target = $region12
      $region11: #{tpu_custom_call.1} parent=5 // pred_region
        %s150 = ssub.s32 %s16, 1
      $region12: #{tpu_custom_call.1} parent=5 // pred_fallthru
        _
      %p151 = scmp.lt.s32.totalorder %s16, 2
      // Predicated region
      $region13: #{tpu_custom_call.1} parent=5 // pred_check
        %p152 = pneg %p151
      $region14: #{tpu_custom_call.1} parent=5 // pred_check_branch
        %154 = sbr.rel (%p152) target = $region16
      $region15: #{tpu_custom_call.1} parent=5 // pred_region
        // Predicated region
        $region17: #{tpu_custom_call.1} parent=15 // pred_check
          %p155 = pneg %p50
        $region18: #{tpu_custom_call.1} parent=15 // pred_check_branch
          %157 = sbr.rel (%p155) target = $region20
        $region19: #{tpu_custom_call.1} parent=15 // pred_region
          %s158 = sand.u32 %s40, 1
          %s159 = scalar_lea.sflag [#allocation5], %s158
          %s160 = sand.u32 %s40, 1
          %s161 = smul.addr %s160, 8
          %s162 = scalar_lea.vmem [#allocation4], %s161
          %s163 = smul.u32 2, %s24
          %s165 = ssub.s32 128, 128
          %166 = vsyncadd %s159, %s165
          %s167 = smul.addr %s23, 2
          %s168 = sadd.s32 %s163, %s167
          %s169 = smul.addr %s168, 64
          %s170 = scalar_lea.hbm %s0, %s169
          %s172 = sshll.u32 %s162, 4
          %s173 = int_to_ptr.vmem [resolvable:$true] %s172
          %175 = dma.hbm_to_vmem [thread:$0]  %s170, 128, %s173, %s159
        $region20: #{tpu_custom_call.1} parent=15 // pred_fallthru
          _
        // Predicated region
        $region21: #{tpu_custom_call.1} parent=15 // pred_check
          %p176 = pneg %p78
        $region22: #{tpu_custom_call.1} parent=15 // pred_check_branch
          %178 = sbr.rel (%p176) target = $region24
        $region23: #{tpu_custom_call.1} parent=15 // pred_region
          %s179 = sand.u32 %s68, 1
          %s180 = scalar_lea.sflag [#allocation7], %s179
          %s181 = sand.u32 %s68, 1
          %s182 = smul.addr %s181, 2
          %s183 = scalar_lea.vmem [#allocation6], %s182
          %s184 = smul.u32 2, %s24
          %s186 = ssub.s32 32, 32
          %187 = vsyncadd %s180, %s186
          %s188 = smul.addr %s23, 2
          %s189 = sadd.s32 %s184, %s188
          %s190 = smul.addr %s189, 16
          %s191 = scalar_lea.hbm %s1, %s190
          %s193 = sshll.u32 %s183, 4
          %s194 = int_to_ptr.vmem [resolvable:$true] %s193
          %196 = dma.hbm_to_vmem [thread:$0]  %s191, 32, %s194, %s180
        $region24: #{tpu_custom_call.1} parent=15 // pred_fallthru
          _
      $region16: #{tpu_custom_call.1} parent=5 // pred_fallthru
        _
      %p197 = scmp.le.s32.totalorder 1, %s16
      %p198 = scmp.lt.s32.totalorder %s16, 3
      %p199 = pnand %p197, %p198
      %p200 = pneg %p199
      // Predicated region
      $region25: #{tpu_custom_call.1} parent=5 // pred_check
        _
      $region26: #{tpu_custom_call.1} parent=5 // pred_check_branch
        %202 = sbr.rel (%p199) target = $region28
      $region27: #{tpu_custom_call.1} parent=5 // pred_region
        %s203 = ssub.s32 %s16, 1
        %s204 = sand.u32 %s43, 1
        %s205 = scalar_lea.sflag [#allocation5], %s204
        %s206 = sand.u32 %s43, 1
        %s207 = smul.addr %s206, 8
        %s208 = scalar_lea.vmem [#allocation4], %s207
        // Predicated region
        $region29: #{tpu_custom_call.1} parent=27 // pred_check
          %p209 = pneg %p56
        $region30: #{tpu_custom_call.1} parent=27 // pred_check_branch
          %211 = sbr.rel (%p209) target = $region32
        $region31: #{tpu_custom_call.1} parent=27 // pred_region
          %212 = dma.done %s205, 128
        $region32: #{tpu_custom_call.1} parent=27 // pred_fallthru
          _
        %s213 = sand.u32 %s71, 1
        %s214 = scalar_lea.sflag [#allocation7], %s213
        %s215 = sand.u32 %s71, 1
        %s216 = smul.addr %s215, 2
        %s217 = scalar_lea.vmem [#allocation6], %s216
        // Predicated region
        $region33: #{tpu_custom_call.1} parent=27 // pred_check
          %p218 = pneg %p84
        $region34: #{tpu_custom_call.1} parent=27 // pred_check_branch
          %220 = sbr.rel (%p218) target = $region36
        $region35: #{tpu_custom_call.1} parent=27 // pred_region
          %221 = dma.done %s214, 32
        $region36: #{tpu_custom_call.1} parent=27 // pred_fallthru
          _
        %s222 = sand.u32 %s43, 1
        %s223 = scalar_lea.sflag [#allocation5], %s222
        %s224 = sand.u32 %s43, 1
        %s225 = smul.addr %s224, 8
        %s226 = scalar_lea.vmem [#allocation4], %s225
        %p227 = pneg %p56
        %p228 = pneg %p53
        %s229 = sand.u32 %s71, 1
        %s230 = scalar_lea.sflag [#allocation7], %s229
        %s231 = sand.u32 %s71, 1
        %s232 = smul.addr %s231, 2
        %s233 = scalar_lea.vmem [#allocation6], %s232
        %p234 = pneg %p84
        %p235 = pneg %p81
        %p236 = pneg %p110
        %p237 = pneg %p107
        %p238 = scmp.lt.s32.totalorder %s25, 1
        %s239 = scalar_select %p238, %s25, 1
        %s240 = scalar_lea.vmem %s2, %s239
        %p241 = pneg %p136
        %p242 = pneg %p133
        %p243 = scmp.lt.s32.totalorder %s25, 1
        %s244 = scalar_select %p243, %s25, 1
        %s245 = scalar_lea.vmem %s3, %s244
        %s246 = smul.u32 2, %s26
        %s247 = smul.u32 2, %s26
        %p248 = scmp.lt.s32.totalorder %s25, 1
        %s249 = scalar_select %p248, %s25, 1
        %s250 = scalar_lea.vmem %s2, %s249
        %p251 = scmp.lt.s32.totalorder %s25, 1
        %s252 = scalar_select %p251, %s25, 1
        %s253 = scalar_lea.vmem %s3, %s252
        %p254 = scmp.eq.s32.totalorder %s26, 0
        // Predicated region
        $region37: #{tpu_custom_call.1} parent=27 // pred_check
          %p255 = pneg %p254
        $region38: #{tpu_custom_call.1} parent=27 // pred_check_branch
          %257 = sbr.rel (%p255) target = $region40
        $region39: #{tpu_custom_call.1} parent=27 // pred_region
          %v258 = vlaneseq
          %vm259 = vcmp.ge.s32.totalorder %v258, 0
          %vm260 = vcmp.lt.s32.totalorder %v258, 256
          %vm261 = vmand %vm259, %vm260
          %262 = vst.msk [vmem:[#allocation2] sm:$0x3] %vm261, 0.0
          %263 = vst.msk [vmem:[#allocation3] sm:$0x3] %vm261, 0.0
        $region40: #{tpu_custom_call.1} parent=27 // pred_fallthru
          _
        %v264 = vld [vmem:[%s208] sm:$0xff]
        %v265 = vld [vmem:[%s217] sm:$0x3]
        %v266 = vlaneseq
        %v267 = vand.u32 %v266, 127
        %v268 = vadd.s32 %v267, 128
        %s269 = smul.u32 %s26, 256
        %v270 = vstv %s269
        %v271 = vadd.s32 %v267, %v270
        %v272 = vadd.s32 %v268, %v270
        %vm273 = vcmp.ne.s32.totalorder %v265, 4294967196
        %vm274 = vcmp.lt.s32.totalorder %v271, 256
        %vm275 = vcmp.lt.s32.totalorder %v272, 256
        %v276 = vsel %vm274, 1, 0
        %v277 = vsel %vm275, 1, 0
        %v278 = vcombine.low %v276, %v277
        %v280 = vunpack.c.l.s4 1966171168
        %v281 = vunpack.c.0.s8 %v280
        %v282 = vlaneseq
        %v283 = vshrl.u32 %v282, 7
        %v284 = vsub.s32 %v281, %v283
        %v285 = vrot.slane %v278, %v284
        %v287 = vunpack.c.l.s4 1966171168
        %v288 = vunpack.c.0.s8 %v287
        %v289 = vlaneseq
        %v290 = vshrl.u32 %v289, 7
        %v291 = vsub.s32 %v288, %v290
        %v292 = vrot.slane %v285, %v291
        %vm293 = vcmp.ne.s32.totalorder %v292, 0
        %vm294 = vmand %vm273, %vm293
        %v295 = vsel %vm294, %v265, 0
        %v297 = vcombine.high %v264, %v264
        %vm299 = vcmask 1043456
        %v300 = vsel %vm299, %v264, -inf
        %v301 = vrot.slane %v300, 4
        %v302 = vmax.f32 %v300, %v301
        %v303 = vrot.slane %v302, 2
        %v304 = vmax.f32 %v302, %v303
        %v305 = vrot.slane %v304, 1
        %v306 = vmax.f32 %v304, %v305
        %v307 = vsel %vm299, %v297, -inf
        %v308 = vrot.slane %v307, 4
        %v309 = vmax.f32 %v307, %v308
        %v310 = vrot.slane %v309, 2
        %v311 = vmax.f32 %v309, %v310
        %v312 = vrot.slane %v311, 1
        %v313 = vmax.f32 %v311, %v312
        %v316 = vcombine.low %v306, %v313
        %v318 = vsub.f32 %v264, %v316
        %v319 = vmul.f32 %v318, 1.442695
        %v320 = vpow.pop %v319
        %v322 = vcombine.high %v320, %v320
        %v324 = vsel %vm299, %v320, 0.0
        %v325 = vrot.slane %v324, 4
        %v326 = vadd.f32 %v324, %v325
        %v327 = vrot.slane %v326, 2
        %v328 = vadd.f32 %v326, %v327
        %v329 = vrot.slane %v328, 1
        %v330 = vadd.f32 %v328, %v329
        %v331 = vsel %vm299, %v322, 0.0
        %v332 = vrot.slane %v331, 4
        %v333 = vadd.f32 %v331, %v332
        %v334 = vrot.slane %v333, 2
        %v335 = vadd.f32 %v333, %v334
        %v336 = vrot.slane %v335, 1
        %v337 = vadd.f32 %v335, %v336
        %v338 = vlog2.pop %v330
        %v339 = vmul.f32 %v338, 0.6931472
        %v340 = vlog2.pop %v337
        %v341 = vmul.f32 %v340, 0.6931472
        %v342 = vadd.f32 %v306, %v339
        %v343 = vadd.f32 %v313, %v341
        %v344 = vlaneseq
        %v345 = vshrl.u32 %v344, 7
        %v346 = vlaneseq
        %v347 = vshrl.u32 %v346, 7
        %v348 = vsub.s32 0, %v347
        %v349 = vrot.slane %v295, %v348
        %v350 = vlaneseq
        %v351 = vshrl.u32 %v350, 7
        %v352 = vsub.s32 1, %v351
        %v353 = vrot.slane %v295, %v352
        %vm354 = vcmp.eq.s32.totalorder %v345, %v349
        %vm355 = vcmp.eq.s32.totalorder %v345, %v353
        %v356 = vsel %vm354, %v264, 0.0
        %v357 = vsel %vm355, %v297, 0.0
        %v358 = vsel %vm299, %v356, 0.0
        %v359 = vrot.slane %v358, 4
        %v360 = vadd.f32 %v358, %v359
        %v361 = vrot.slane %v360, 2
        %v362 = vadd.f32 %v360, %v361
        %v363 = vrot.slane %v362, 1
        %v364 = vadd.f32 %v362, %v363
        %v365 = vsel %vm299, %v357, 0.0
        %v366 = vrot.slane %v365, 4
        %v367 = vadd.f32 %v365, %v366
        %v368 = vrot.slane %v367, 2
        %v369 = vadd.f32 %v367, %v368
        %v370 = vrot.slane %v369, 1
        %v371 = vadd.f32 %v369, %v370
        %v372 = vld [vmem:[#allocation2] sm:$0x3]
        %v373 = vsub.f32 %v342, %v364
        %v374 = vsub.f32 %v343, %v371
        %v377 = vcombine.low %v373, %v374
        %v379 = vunpack.c.l.s4 1966171168
        %v380 = vunpack.c.0.s8 %v379
        %v381 = vlaneseq
        %v382 = vshrl.u32 %v381, 7
        %v383 = vsub.s32 %v380, %v382
        %v384 = vrot.slane %v377, %v383
        %v386 = vunpack.c.l.s4 1966171168
        %v387 = vunpack.c.0.s8 %v386
        %v388 = vlaneseq
        %v389 = vshrl.u32 %v388, 7
        %v390 = vsub.s32 %v387, %v389
        %v391 = vrot.slane %v384, %v390
        %v393 = vsel %vm294, %v391, 0.0
        %v394 = vadd.f32 %v372, %v393
        %v395 = vlaneseq
        %vm396 = vcmp.ge.s32.totalorder %v395, 0
        %vm397 = vcmp.lt.s32.totalorder %v395, 256
        %vm398 = vmand %vm396, %vm397
        %399 = vst.msk [vmem:[#allocation2] sm:$0x3] %vm398, %v394
        %v400 = vld [vmem:[#allocation3] sm:$0x3]
        %v401 = vsel %vm294, 1, 0
        %v402 = vcvt.s32.f32 %v401
        %v403 = vadd.f32 %v400, %v402
        %404 = vst.msk [vmem:[#allocation3] sm:$0x3] %vm398, %v403
        // Predicated region
        $region41: #{tpu_custom_call.1} parent=27 // pred_check
          %p405 = pneg %p254
        $region42: #{tpu_custom_call.1} parent=27 // pred_check_branch
          %407 = sbr.rel (%p405) target = $region44
        $region43: #{tpu_custom_call.1} parent=27 // pred_region
          %v408 = vld [vmem:[#allocation2] sm:$0x3]
          %v410 = vlaneseq
          %v411 = vshrl.u32 %v410, 7
          %v412 = vsub.s32 0, %v411
          %v413 = vrot.slane %v408, %v412
          %v414 = vlaneseq
          %v415 = vshrl.u32 %v414, 7
          %v416 = vsub.s32 1, %v415
          %v417 = vrot.slane %v408, %v416
          %vm420 = vcmask 1040384
          %v421 = vsel %vm420, %v413, 0.0
          %v422 = vsel %vm420, %v417, 0.0
          %v423 = vadd.f32 %v421, %v422
          %424 = vadd.xlane.f32.xlu0 %v423
          %v425 = vpop.xlane.xlu0 %424
          %v426 = vrot.slane %v425, 4
          %v427 = vadd.f32 %v425, %v426
          %v428 = vrot.slane %v427, 2
          %v429 = vadd.f32 %v427, %v428
          %v430 = vrot.slane %v429, 1
          %v431 = vadd.f32 %v429, %v430
          %s432 = vtos %v431
          %v433 = vstv %s432
          %vm434 = vcmask 0
          %435 = vst.msk [vmem:[%s250] sm:$0x1] %vm434, %v433
          %v436 = vld [vmem:[#allocation3] sm:$0x3]
          %v438 = vlaneseq
          %v439 = vshrl.u32 %v438, 7
          %v440 = vsub.s32 0, %v439
          %v441 = vrot.slane %v436, %v440
          %v442 = vlaneseq
          %v443 = vshrl.u32 %v442, 7
          %v444 = vsub.s32 1, %v443
          %v445 = vrot.slane %v436, %v444
          %v448 = vsel %vm420, %v441, 0.0
          %v449 = vsel %vm420, %v445, 0.0
          %v450 = vadd.f32 %v448, %v449
          %451 = vadd.xlane.f32.xlu0 %v450
          %v452 = vpop.xlane.xlu0 %451
          %v453 = vrot.slane %v452, 4
          %v454 = vadd.f32 %v452, %v453
          %v455 = vrot.slane %v454, 2
          %v456 = vadd.f32 %v454, %v455
          %v457 = vrot.slane %v456, 1
          %v458 = vadd.f32 %v456, %v457
          %s459 = vtos %v458
          %v460 = vstv %s459
          %461 = vst.msk [vmem:[%s253] sm:$0x1] %vm434, %v460
        $region44: #{tpu_custom_call.1} parent=27 // pred_fallthru
          _
        %p462 = scmp.lt.s32.totalorder %s25, 1
        %s463 = scalar_select %p462, %s25, 1
        %s464 = scalar_lea.vmem %s2, %s463
        %p465 = scmp.lt.s32.totalorder %s25, 1
        %s466 = scalar_select %p465, %s25, 1
        %s467 = scalar_lea.vmem %s3, %s466
        // Predicated region
        $region45: #{tpu_custom_call.1} parent=27 // pred_check
          %p468 = pneg %p107
        $region46: #{tpu_custom_call.1} parent=27 // pred_check_branch
          %470 = sbr.rel (%p468) target = $region48
        $region47: #{tpu_custom_call.1} parent=27 // pred_region
          _
        $region48: #{tpu_custom_call.1} parent=27 // pred_fallthru
          _
        // Predicated region
        $region49: #{tpu_custom_call.1} parent=27 // pred_check
          %p471 = pneg %p133
        $region50: #{tpu_custom_call.1} parent=27 // pred_check_branch
          %473 = sbr.rel (%p471) target = $region52
        $region51: #{tpu_custom_call.1} parent=27 // pred_region
          _
        $region52: #{tpu_custom_call.1} parent=27 // pred_fallthru
          _
      $region28: #{tpu_custom_call.1} parent=5 // pred_fallthru
        _
      %p474 = scmp.le.s32.totalorder 2, %s16
      // Predicated region
      $region53: #{tpu_custom_call.1} parent=5 // pred_check
        %p475 = pneg %p474
      $region54: #{tpu_custom_call.1} parent=5 // pred_check_branch
        %477 = sbr.rel (%p475) target = $region56
      $region55: #{tpu_custom_call.1} parent=5 // pred_region
        %s478 = ssub.s32 %s16, 2
        // Predicated region
        $region57: #{tpu_custom_call.1} parent=55 // pred_check
          %p479 = pneg %p113
        $region58: #{tpu_custom_call.1} parent=55 // pred_check_branch
          %481 = sbr.rel (%p479) target = $region60
        $region59: #{tpu_custom_call.1} parent=55 // pred_region
          %p482 = scmp.lt.s32.totalorder %s27, 1
          %s483 = scalar_select %p482, %s27, 1
          %s484 = scalar_lea.vmem %s2, %s483
        $region60: #{tpu_custom_call.1} parent=55 // pred_fallthru
          _
        // Predicated region
        $region61: #{tpu_custom_call.1} parent=55 // pred_check
          %p485 = pneg %p139
        $region62: #{tpu_custom_call.1} parent=55 // pred_check_branch
          %487 = sbr.rel (%p485) target = $region64
        $region63: #{tpu_custom_call.1} parent=55 // pred_region
          %p488 = scmp.lt.s32.totalorder %s27, 1
          %s489 = scalar_select %p488, %s27, 1
          %s490 = scalar_lea.vmem %s3, %s489
        $region64: #{tpu_custom_call.1} parent=55 // pred_fallthru
          _
      $region56: #{tpu_custom_call.1} parent=5 // pred_fallthru
        _
    $region6: #{tpu_custom_call.1} parent=1 // loop_footer
      %s20 = sadd.s32 1, %s16
    $region7: #{tpu_custom_call.1} parent=1 // loop_footer_branch
      %15 = sbr.rel target = $region3
    $region8: #{tpu_custom_call.1} parent=1 // loop_exit
      _
    %491 = vsyncpa [#allocation5], 1
    %s492 = scalar_lea.sflag [#allocation5], 1
    %493 = vsyncpa %s492, 1
    %494 = vsyncpa [#allocation7], 1
    %s495 = scalar_lea.sflag [#allocation7], 1
    %496 = vsyncpa %s495, 1

</llo_original>
